<compile_context>
chip_gen: v5e
topology: v5e:2x2
jax: 0.10.0
libtpu: 0.0.40
codegen_flags: <defaults>
</compile_context>

<pallas_src>
import jax
import jax.numpy as jnp
from jax.experimental import pallas as pl
from jax.experimental.pallas import tpu as pltpu

_LANES = 128


def _pick_ts(S, row_bytes, target_bytes=5 << 20):
    """Tile size along the flattened-spatial (sublane) axis.

    row_bytes = combined bytes of one (C, 1, 128) row across both inputs.
    Returns the full extent S for small inputs, otherwise a multiple of 8 sized so the
    combined per-step input block is ~target_bytes.  TS does NOT have to divide S: the
    grid uses cdiv and the ragged last block is masked in-kernel.
    """
    cap = max(8, ((target_bytes // max(row_bytes, 1)) // 8) * 8)
    return S if S <= cap else cap


def _make_dice_kernel(C, TS, M, smooth, p_pow, needs_mask):
    def kernel(pred_ref, tgt_ref, pt_ref, den_ref):
        s = pl.program_id(1)

        # Per-n accumulator init (outputs are resident across the s axis only).
        @pl.when(s == 0)
        def _():
            pt_ref[...] = jnp.zeros_like(pt_ref)
            den_ref[...] = jnp.zeros_like(den_ref)

        x = pred_ref[...].astype(jnp.float32)   # (C, TS, 128)
        t = tgt_ref[...].astype(jnp.float32)    # (C, TS, 128)

        # Numerically-stable softmax over the *leading* channel axis: elementwise across
        # the C slabs -> pure VALU.  Exact reciprocal: it only touches the (1, TS, 128)
        # denominator (1/C of the elements), so the exact path is essentially free.
        m = jnp.max(x, axis=0, keepdims=True)
        e = jnp.exp(x - m)
        denom = jnp.sum(e, axis=0, keepdims=True)
        prob = e * pl.reciprocal(denom, approx=False)

        def accum(prob_v, t_v):
            # Per-step sublane reduction (XLU, otherwise idle) into tiny (C, 128)
            # output-resident accumulators -- no full-tile RMW, no VMEM scratch.
            pt_ref[...] += jnp.sum(prob_v * t_v, axis=1)
            if p_pow == 2:
                dn = prob_v * prob_v + t_v * t_v
            else:
                dn = prob_v ** p_pow + t_v ** p_pow
            den_ref[...] += jnp.sum(dn, axis=1)

        if needs_mask:
            last = pl.num_programs(1) - 1

            @pl.when(s != last)
            def _():
                accum(prob, t)

            @pl.when(s == last)
            def _():
                # Only the final spatial block can contain padded / out-of-range lanes.
                row = jax.lax.broadcasted_iota(jnp.int32, (TS, _LANES), 0)
                lane = jax.lax.broadcasted_iota(jnp.int32, (TS, _LANES), 1)
                flat = (s * TS + row) * _LANES + lane
                valid = flat < M
                # jnp.where (select) rather than multiply: NaN-safe for any garbage in a
                # partially out-of-bounds last block.
                accum(jnp.where(valid[None], prob, 0.0),
                      jnp.where(valid[None], t, 0.0))
        else:
            accum(prob, t)

    return kernel


def dice_loss(predict, target, smooth=1.0, p=2):
    """predict, target: [N, C, *spatial] (same shape). Returns scalar float32 loss."""
    assert predict.shape == target.shape, "predict & target shape do not match"
    # TODO(synk): `weight` / `ignore_index` options of the PyTorch DiceLoss are not
    # implemented (their defaults of None match this forward pass).
    N, C = int(predict.shape[0]), int(predict.shape[1])
    M = 1
    for d in predict.shape[2:]:
        M *= int(d)

    S = -(-M // _LANES)
    M_pad = S * _LANES

    pred = predict.reshape(N, C, M)   # pure view: no transpose
    tgt = target.reshape(N, C, M)
    if M_pad != M:
        # TODO(synk): this extra pad pass costs one redundant HBM read+write of both
        # tensors when H*W % 128 != 0; a raggedness-aware 3-D layout could avoid it.
        pad = ((0, 0), (0, 0), (0, M_pad - M))
        pred = jnp.pad(pred, pad)
        tgt = jnp.pad(tgt, pad)
    pred = pred.reshape(N, C, S, _LANES)
    tgt = tgt.reshape(N, C, S, _LANES)

    pred_isz = jnp.dtype(pred.dtype).itemsize
    tgt_isz = jnp.dtype(tgt.dtype).itemsize
    row_bytes = C * _LANES * (pred_isz + tgt_isz)

    TS = _pick_ts(S, row_bytes)
    NS = -(-S // TS)                       # cdiv: TS need not divide S
    needs_mask = (M_pad != M) or (S % TS != 0)

    # Explicit VMEM budget: 2 inputs x 2 pipeline buffers x block + resident outputs,
    # with headroom, capped so it stays safe on v7x (64 MiB physical / 32 MiB scoped).
    in_block_bytes = C * TS * _LANES * (pred_isz + tgt_isz)
    out_block_bytes = 2 * C * _LANES * 4
    vmem_need = 2 * in_block_bytes + 2 * out_block_bytes
    vmem_limit = int(min(max(2 * vmem_need, 8 << 20), 30 << 20))

    blk = pl.BlockSpec((None, C, TS, _LANES), lambda n, s: (n, 0, s, 0))
    out_blk = pl.BlockSpec((None, C, _LANES), lambda n, s: (n, 0, 0))
    kernel = _make_dice_kernel(C, TS, M, float(smooth), p, needs_mask)

    # TODO(synk): if xprof on v7x shows exposed DMA, sweep pipeline_mode=pl.Buffered(3)
    # on the two input BlockSpecs (VMEM headroom now exists).
    pt_out, den_out = pl.pallas_call(
        kernel,
        out_shape=(
            jax.ShapeDtypeStruct((N, C, _LANES), jnp.float32),
            jax.ShapeDtypeStruct((N, C, _LANES), jnp.float32),
        ),
        grid_spec=pltpu.PrefetchScalarGridSpec(
            num_scalar_prefetch=0,
            grid=(N, NS),
            in_specs=[blk, blk],
            out_specs=[out_blk, out_blk],
        ),
        compiler_params=pltpu.CompilerParams(
            # N is embarrassingly parallel (per-n partial outputs) -> megacore-friendly;
            # the streaming spatial axis carries the resident accumulators.
            dimension_semantics=("parallel", "arbitrary"),
            vmem_limit_bytes=vmem_limit,
        ),
    )(pred, tgt)

    # Tiny epilogue in plain JAX: per-class totals over batch + lanes, then dice + mean.
    pt_c = jnp.sum(pt_out, axis=(0, 2))      # (C,)
    den_c = jnp.sum(den_out, axis=(0, 2))    # (C,)
    loss_c = 1.0 - (2.0 * pt_c + smooth) / (den_c + smooth)
    return jnp.sum(loss_c) / C


def _dice_loss_reference(predict, target, smooth=1.0, p=2):
    """Pure-JAX reference mirroring the PyTorch DiceLoss forward."""
    C = predict.shape[1]
    prob = jax.nn.softmax(predict.astype(jnp.float32), axis=1)
    t = target.astype(jnp.float32)
    total = 0.0
    for i in range(C):
        pi = prob[:, i].reshape(prob.shape[0], -1)
        ti = t[:, i].reshape(t.shape[0], -1)
        num = jnp.sum(pi * ti) * 2.0 + smooth
        den = jnp.sum(pi ** p + ti ** p) + smooth
        total = total + (1.0 - num / den)
    return total / C


if __name__ == "__main__":
    key = jax.random.PRNGKey(0)
    k1, k2, k3, k4 = jax.random.split(key, 4)

    # Case 1: 128-aligned spatial size (no masking path).
    N, C, H, W = 2, 4, 16, 16
    predict = jax.random.normal(k1, (N, C, H, W), dtype=jnp.float32)
    labels = jax.random.randint(k2, (N, H, W), 0, C)
    # one-hot target in bf16 (exact for 0/1; halves target HBM traffic)
    target = jnp.transpose(jax.nn.one_hot(labels, C, dtype=jnp.bfloat16), (0, 3, 1, 2))

    loss = jax.block_until_ready(dice_loss(predict, target, smooth=1.0, p=2))
    ref = jax.block_until_ready(_dice_loss_reference(predict, target, smooth=1.0, p=2))
    assert jnp.allclose(loss, ref, atol=1e-5, rtol=1e-5), (loss, ref)

    # Case 2: non-128-aligned spatial size, exercising the masked-tail path.
    H2 = W2 = 10
    predict2 = jax.random.normal(k3, (N, C, H2, W2), dtype=jnp.float32)
    labels2 = jax.random.randint(k4, (N, H2, W2), 0, C)
    target2 = jnp.transpose(jax.nn.one_hot(labels2, C, dtype=jnp.bfloat16), (0, 3, 1, 2))

    loss2 = jax.block_until_ready(dice_loss(predict2, target2, smooth=1.0, p=2))
    ref2 = jax.block_until_ready(_dice_loss_reference(predict2, target2, smooth=1.0, p=2))
    assert jnp.allclose(loss2, ref2, atol=1e-5, rtol=1e-5), (loss2, ref2)

    print("KERNEL_OK")
</pallas_src>

<mosaic_0001>
module attributes {stable_mosaic.version = 11 : i64} {
  func.func @kernel(%arg0: i32, %arg1: i32, %arg2: memref<1x4x2x128xf32, #tpu.memory_space<vmem>>, %arg3: memref<1x4x2x128xbf16, #tpu.memory_space<vmem>>, %arg4: memref<1x4x128xf32, #tpu.memory_space<vmem>>, %arg5: memref<1x4x128xf32, #tpu.memory_space<vmem>>) attributes {dimension_semantics = [#tpu.dimension_semantics<parallel>, #tpu.dimension_semantics<arbitrary>], iteration_bounds = array<i64: 2, 1>, scalar_prefetch = 0 : i64, scratch_operands = 0 : i64, tpu.core_type = #tpu.core_type<tc>, window_params = [{transform_indices = @transform_0, window_bounds = array<i64: 1, 4, 2, 128>}, {transform_indices = @transform_1, window_bounds = array<i64: 1, 4, 2, 128>}, {transform_indices = @transform_2, window_bounds = array<i64: 1, 4, 128>}, {transform_indices = @transform_3, window_bounds = array<i64: 1, 4, 128>}]} {
    %c0_i32 = arith.constant 0 : i32
    %0 = arith.cmpi eq, %arg1, %c0_i32 : i32
    %1 = arith.extui %0 : i1 to i32
    %c0_i32_0 = arith.constant 0 : i32
    %2 = arith.cmpi ne, %1, %c0_i32_0 : i32
    scf.if %2 {
      %cst_23 = arith.constant 0.000000e+00 : f32
      %36 = vector.broadcast %cst_23 : f32 to vector<4x128xf32>
      %c0_24 = arith.constant 0 : index
      %c0_25 = arith.constant 0 : index
      %c0_26 = arith.constant 0 : index
      %37 = vector.load %arg4[%c0_24, %c0_25, %c0_26] : memref<1x4x128xf32, #tpu.memory_space<vmem>>, vector<1x4x128xf32>
      %38 = vector.shape_cast %37 : vector<1x4x128xf32> to vector<4x128xf32>
      %39 = vector.shape_cast %36 : vector<4x128xf32> to vector<1x4x128xf32>
      tpu.vector_store %arg4[%c0_24, %c0_25, %c0_26], %39 {strides = array<i32>} : memref<1x4x128xf32, #tpu.memory_space<vmem>>, vector<1x4x128xf32>,
      %cst_27 = arith.constant 0.000000e+00 : f32
      %40 = vector.broadcast %cst_27 : f32 to vector<4x128xf32>
      %c0_28 = arith.constant 0 : index
      %c0_29 = arith.constant 0 : index
      %c0_30 = arith.constant 0 : index
      %41 = vector.load %arg5[%c0_28, %c0_29, %c0_30] : memref<1x4x128xf32, #tpu.memory_space<vmem>>, vector<1x4x128xf32>
      %42 = vector.shape_cast %41 : vector<1x4x128xf32> to vector<4x128xf32>
      %43 = vector.shape_cast %40 : vector<4x128xf32> to vector<1x4x128xf32>
      tpu.vector_store %arg5[%c0_28, %c0_29, %c0_30], %43 {strides = array<i32>} : memref<1x4x128xf32, #tpu.memory_space<vmem>>, vector<1x4x128xf32>,
    } else {
    }
    %c0 = arith.constant 0 : index
    %c0_1 = arith.constant 0 : index
    %c0_2 = arith.constant 0 : index
    %c0_3 = arith.constant 0 : index
    %3 = vector.load %arg2[%c0, %c0_1, %c0_2, %c0_3] : memref<1x4x2x128xf32, #tpu.memory_space<vmem>>, vector<1x4x2x128xf32>
    %4 = vector.shape_cast %3 : vector<1x4x2x128xf32> to vector<4x2x128xf32>
    %c0_4 = arith.constant 0 : index
    %c0_5 = arith.constant 0 : index
    %c0_6 = arith.constant 0 : index
    %c0_7 = arith.constant 0 : index
    %5 = vector.load %arg3[%c0_4, %c0_5, %c0_6, %c0_7] : memref<1x4x2x128xbf16, #tpu.memory_space<vmem>>, vector<1x4x2x128xbf16>
    %6 = vector.shape_cast %5 : vector<1x4x2x128xbf16> to vector<4x2x128xbf16>
    %7 = arith.extf %6 : vector<4x2x128xbf16> to vector<4x2x128xf32>
    %cst = arith.constant dense<0xFF800000> : vector<2x128xf32>
    %8 = vector.multi_reduction <maximumf>, %4, %cst [0] : vector<4x2x128xf32> to vector<2x128xf32>
    %9 = vector.shape_cast %8 : vector<2x128xf32> to vector<1x2x128xf32>
    %10 = vector.broadcast %9 : vector<1x2x128xf32> to vector<4x2x128xf32>
    %11 = arith.subf %4, %10 : vector<4x2x128xf32>
    %12 = math.exp %11 : vector<4x2x128xf32>
    %cst_8 = arith.constant dense<0.000000e+00> : vector<2x128xf32>
    %13 = vector.multi_reduction <add>, %12, %cst_8 [0] : vector<4x2x128xf32> to vector<2x128xf32>
    %14 = vector.shape_cast %13 : vector<2x128xf32> to vector<1x2x128xf32>
    %15 = tpu.reciprocal %14 : vector<1x2x128xf32> -> vector<1x2x128xf32>
    %16 = vector.broadcast %15 : vector<1x2x128xf32> to vector<4x2x128xf32>
    %17 = arith.mulf %12, %16 : vector<4x2x128xf32>
    %c0_9 = arith.constant 0 : index
    %c0_10 = arith.constant 0 : index
    %c0_11 = arith.constant 0 : index
    %18 = vector.load %arg4[%c0_9, %c0_10, %c0_11] : memref<1x4x128xf32, #tpu.memory_space<vmem>>, vector<1x4x128xf32>
    %19 = vector.shape_cast %18 : vector<1x4x128xf32> to vector<4x128xf32>
    %20 = arith.mulf %17, %7 : vector<4x2x128xf32>
    %cst_12 = arith.constant dense<0.000000e+00> : vector<4x128xf32>
    %21 = vector.multi_reduction <add>, %20, %cst_12 [1] : vector<4x2x128xf32> to vector<4x128xf32>
    %22 = arith.addf %19, %21 : vector<4x128xf32>
    %c0_13 = arith.constant 0 : index
    %c0_14 = arith.constant 0 : index
    %c0_15 = arith.constant 0 : index
    %23 = vector.load %arg4[%c0_13, %c0_14, %c0_15] : memref<1x4x128xf32, #tpu.memory_space<vmem>>, vector<1x4x128xf32>
    %24 = vector.shape_cast %23 : vector<1x4x128xf32> to vector<4x128xf32>
    %25 = vector.shape_cast %22 : vector<4x128xf32> to vector<1x4x128xf32>
    tpu.vector_store %arg4[%c0_13, %c0_14, %c0_15], %25 {strides = array<i32>} : memref<1x4x128xf32, #tpu.memory_space<vmem>>, vector<1x4x128xf32>,
    %26 = arith.mulf %17, %17 : vector<4x2x128xf32>
    %27 = arith.mulf %7, %7 : vector<4x2x128xf32>
    %28 = arith.addf %26, %27 : vector<4x2x128xf32>
    %c0_16 = arith.constant 0 : index
    %c0_17 = arith.constant 0 : index
    %c0_18 = arith.constant 0 : index
    %29 = vector.load %arg5[%c0_16, %c0_17, %c0_18] : memref<1x4x128xf32, #tpu.memory_space<vmem>>, vector<1x4x128xf32>
    %30 = vector.shape_cast %29 : vector<1x4x128xf32> to vector<4x128xf32>
    %cst_19 = arith.constant dense<0.000000e+00> : vector<4x128xf32>
    %31 = vector.multi_reduction <add>, %28, %cst_19 [1] : vector<4x2x128xf32> to vector<4x128xf32>
    %32 = arith.addf %30, %31 : vector<4x128xf32>
    %c0_20 = arith.constant 0 : index
    %c0_21 = arith.constant 0 : index
    %c0_22 = arith.constant 0 : index
    %33 = vector.load %arg5[%c0_20, %c0_21, %c0_22] : memref<1x4x128xf32, #tpu.memory_space<vmem>>, vector<1x4x128xf32>
    %34 = vector.shape_cast %33 : vector<1x4x128xf32> to vector<4x128xf32>
    %35 = vector.shape_cast %32 : vector<4x128xf32> to vector<1x4x128xf32>
    tpu.vector_store %arg5[%c0_20, %c0_21, %c0_22], %35 {strides = array<i32>} : memref<1x4x128xf32, #tpu.memory_space<vmem>>, vector<1x4x128xf32>,
    return
  }
  func.func @transform_0(%arg0: i32, %arg1: i32) -> (i32, i32, i32, i32) {
    %c0_i32 = arith.constant 0 : i32
    %c0_i32_0 = arith.constant 0 : i32
    %c0_i32_1 = arith.constant 0 : i32
    return %arg0, %c0_i32, %arg1, %c0_i32_0 : i32, i32, i32, i32
  }
  func.func @transform_1(%arg0: i32, %arg1: i32) -> (i32, i32, i32, i32) {
    %c0_i32 = arith.constant 0 : i32
    %c0_i32_0 = arith.constant 0 : i32
    %c0_i32_1 = arith.constant 0 : i32
    return %arg0, %c0_i32, %arg1, %c0_i32_0 : i32, i32, i32, i32
  }
  func.func @transform_2(%arg0: i32, %arg1: i32) -> (i32, i32, i32) {
    %c0_i32 = arith.constant 0 : i32
    %c0_i32_0 = arith.constant 0 : i32
    %c0_i32_1 = arith.constant 0 : i32
    return %arg0, %c0_i32, %c0_i32_0 : i32, i32, i32
  }
  func.func @transform_3(%arg0: i32, %arg1: i32) -> (i32, i32, i32) {
    %c0_i32 = arith.constant 0 : i32
    %c0_i32_0 = arith.constant 0 : i32
    %c0_i32_1 = arith.constant 0 : i32
    return %arg0, %c0_i32, %c0_i32_0 : i32, i32, i32
  }
}

</mosaic_0001>

<llo_original>
// kernel: tpu_custom_call.1
$region0: #{tpu_custom_call.1}
  #allocation0 [shape = 'u32[]', space=smem, size = 0x4, offset = 0x4, fixed_abs, tag = 'smem constant byte address 0x4 - core index']
  #allocation1 [shape = 'u32[72,128]{1,0:T(1,128)}', space=vmem, size = 0x9000, scoped, tag = 'internal scratch']
  %s0 = inlined_call_operand.hbm [shape: f32[2,4,2,128], index: 0, kind: input, shape index: {}]
  %s1 = inlined_call_operand.hbm [shape: bf16[2,4,2,128], index: 1, kind: input, shape index: {}]
  %s2 = inlined_call_operand.hbm [shape: f32[2,4,128], index: 2, kind: output, shape index: {0}]
  %s3 = inlined_call_operand.hbm [shape: f32[2,4,128], index: 3, kind: output, shape index: {1}]
  %4 = xla_tuple %s2, %s3
  %s5 = sld [smem:[#allocation0]]
  $region61: #{tpu_custom_call.1} parent=0
    _
  %s7 = ssub.s32 1, %s5
  %s8 = scalar_select 0, %s7, %s5
  $region1: #{tpu_custom_call.1} parent=0
    #allocation2 [shape = 'u8[8192]{0}', space=vmem, size = 0x2000, scoped, tag = 'input window, operand 0']
    #allocation3 [shape = 's32[2]{0}', space=sflag, size = 0x8, scoped, tag = 'scoped memory for tpu_custom_call.1']
    #allocation4 [shape = 's32[2]{0}', space=sflag, size = 0x8, scoped, tag = 'scoped memory for tpu_custom_call.1']
    #allocation5 [shape = 'u8[4096]{0}', space=vmem, size = 0x1000, scoped, tag = 'input window, operand 1']
    #allocation6 [shape = 's32[2]{0}', space=sflag, size = 0x8, scoped, tag = 'scoped memory for tpu_custom_call.1']
    #allocation7 [shape = 'u8[4096]{0}', space=vmem, size = 0x1000, scoped, tag = 'output window, operand 0']
    #allocation8 [shape = 'u8[4096]{0}', space=vmem, size = 0x1000, scoped, tag = 'output window, operand 1']
    #allocation9 [shape = 's32[2]{0}', space=sflag, size = 0x8, scoped, tag = 'scoped memory for tpu_custom_call.1']
    %9 = vsyncpa [#allocation3], 0
    %s10 = scalar_lea.sflag [#allocation3], 1
    %11 = vsyncpa %s10, 0
    %12 = vsyncpa [#allocation6], 0
    %s13 = scalar_lea.sflag [#allocation6], 1
    %14 = vsyncpa %s13, 0
    %15 = vsyncpa [#allocation4], 0
    %s16 = scalar_lea.sflag [#allocation4], 1
    %17 = vsyncpa %s16, 0
    %18 = vsyncpa [#allocation9], 0
    %s19 = scalar_lea.sflag [#allocation9], 1
    %20 = vsyncpa %s19, 0
    loop: start=0, step=1, limit=4
    $region2: #{tpu_custom_call.1} parent=1 // loop_pre_header
      _
    $region3: #{tpu_custom_call.1} parent=1 // loop_header
      %s22 = sphi 0, %s26
      %p23 = scmp.ge.s32.totalorder %s22, 4
      %s29 = sphi 0, %s41
      %s30 = sphi 0, %s37
      %s31 = sphi 0, %s29
      %s32 = sphi 0, %s30
      %s33 = sphi 0, %s31
      %s34 = sphi 0, %s32
      %s46 = sphi 0, %s48
      %s49 = sphi 0, %s46
      %s50 = sphi 0, %s49
      %s66 = sphi 0, %s50
      %s74 = sphi 0, %s76
      %s77 = sphi 0, %s74
      %s78 = sphi 0, %s77
      %s94 = sphi 0, %s78
      %s100 = sphi 0, %s102
      %s103 = sphi 0, %s100
      %s104 = sphi 0, %s103
      %s120 = sphi 0, %s104
      %s126 = sphi 0, %s128
      %s129 = sphi 0, %s126
      %s130 = sphi 0, %s129
      %s146 = sphi 0, %s130
    $region4: #{tpu_custom_call.1} parent=1 // loop_header_branch
      %25 = sbr.rel (%p23) target = $region8
    $region5: #{tpu_custom_call.1} parent=1 // loop_body
      %s27 = ssub.s32 %s22, 1
      %s28 = ssub.s32 %s22, 2
      %s35 = sadd.s32 1, %s30
      %p36 = scmp.ge.s32.totalorder %s35, 1
      %s37 = scalar_select %p36, 0, %s35
      %s38 = sadd.s32 1, %s29
      %s39 = scalar_select %p36, %s38, %s29
      %p40 = scmp.ge.s32.totalorder %s39, 2
      %s41 = scalar_select %p40, 0, %s39
      %s42 = ssub.s32 %s29, %s41
      %s43 = ssub.s32 %s30, %s37
      %s44 = sor.u32 %s42, %s43
      %p45 = scmp.eq.s32.totalorder %s44, 0
      %s47 = sadd.s32 %s46, 1
      %s48 = scalar_select %p45, %s46, %s47
      %p51 = pneg %p45
      %p52 = scmp.eq.s32.totalorder %s22, 1
      %p53 = por %p51, %p52
      %p54 = scmp.ne.s32.totalorder %s46, %s49
      %p55 = scmp.eq.s32.totalorder %s22, 0
      %p56 = por %p54, %p55
      %p57 = scmp.ne.s32.totalorder %s46, %s49
      %p58 = scmp.eq.s32.totalorder %s27, 1
      %p59 = por %p57, %p58
      %p60 = scmp.ne.s32.totalorder %s49, %s50
      %p61 = scmp.eq.s32.totalorder %s27, 0
      %p62 = por %p60, %p61
      %p63 = scmp.ne.s32.totalorder %s49, %s50
      %p64 = scmp.eq.s32.totalorder %s28, 1
      %p65 = por %p63, %p64
      %p67 = scmp.ne.s32.totalorder %s50, %s66
      %p68 = scmp.eq.s32.totalorder %s28, 0
      %p69 = por %p67, %p68
      %s70 = ssub.s32 %s29, %s41
      %s71 = ssub.s32 %s30, %s37
      %s72 = sor.u32 %s70, %s71
      %p73 = scmp.eq.s32.totalorder %s72, 0
      %s75 = sadd.s32 %s74, 1
      %s76 = scalar_select %p73, %s74, %s75
      %p79 = pneg %p73
      %p80 = scmp.eq.s32.totalorder %s22, 1
      %p81 = por %p79, %p80
      %p82 = scmp.ne.s32.totalorder %s74, %s77
      %p83 = scmp.eq.s32.totalorder %s22, 0
      %p84 = por %p82, %p83
      %p85 = scmp.ne.s32.totalorder %s74, %s77
      %p86 = scmp.eq.s32.totalorder %s27, 1
      %p87 = por %p85, %p86
      %p88 = scmp.ne.s32.totalorder %s77, %s78
      %p89 = scmp.eq.s32.totalorder %s27, 0
      %p90 = por %p88, %p89
      %p91 = scmp.ne.s32.totalorder %s77, %s78
      %p92 = scmp.eq.s32.totalorder %s28, 1
      %p93 = por %p91, %p92
      %p95 = scmp.ne.s32.totalorder %s78, %s94
      %p96 = scmp.eq.s32.totalorder %s28, 0
      %p97 = por %p95, %p96
      %s98 = ssub.s32 %s29, %s41
      %p99 = scmp.eq.s32.totalorder %s98, 0
      %s101 = sadd.s32 %s100, 1
      %s102 = scalar_select %p99, %s100, %s101
      %p105 = pneg %p99
      %p106 = scmp.eq.s32.totalorder %s22, 1
      %p107 = por %p105, %p106
      %p108 = scmp.ne.s32.totalorder %s100, %s103
      %p109 = scmp.eq.s32.totalorder %s22, 0
      %p110 = por %p108, %p109
      %p111 = scmp.ne.s32.totalorder %s100, %s103
      %p112 = scmp.eq.s32.totalorder %s27, 1
      %p113 = por %p111, %p112
      %p114 = scmp.ne.s32.totalorder %s103, %s104
      %p115 = scmp.eq.s32.totalorder %s27, 0
      %p116 = por %p114, %p115
      %p117 = scmp.ne.s32.totalorder %s103, %s104
      %p118 = scmp.eq.s32.totalorder %s28, 1
      %p119 = por %p117, %p118
      %p121 = scmp.ne.s32.totalorder %s104, %s120
      %p122 = scmp.eq.s32.totalorder %s28, 0
      %p123 = por %p121, %p122
      %s124 = ssub.s32 %s29, %s41
      %p125 = scmp.eq.s32.totalorder %s124, 0
      %s127 = sadd.s32 %s126, 1
      %s128 = scalar_select %p125, %s126, %s127
      %p131 = pneg %p125
      %p132 = scmp.eq.s32.totalorder %s22, 1
      %p133 = por %p131, %p132
      %p134 = scmp.ne.s32.totalorder %s126, %s129
      %p135 = scmp.eq.s32.totalorder %s22, 0
      %p136 = por %p134, %p135
      %p137 = scmp.ne.s32.totalorder %s126, %s129
      %p138 = scmp.eq.s32.totalorder %s27, 1
      %p139 = por %p137, %p138
      %p140 = scmp.ne.s32.totalorder %s129, %s130
      %p141 = scmp.eq.s32.totalorder %s27, 0
      %p142 = por %p140, %p141
      %p143 = scmp.ne.s32.totalorder %s129, %s130
      %p144 = scmp.eq.s32.totalorder %s28, 1
      %p145 = por %p143, %p144
      %p147 = scmp.ne.s32.totalorder %s130, %s146
      %p148 = scmp.eq.s32.totalorder %s28, 0
      %p149 = por %p147, %p148
      %p150 = scmp.le.s32.totalorder 1, %s22
      %p151 = scmp.lt.s32.totalorder %s22, 3
      %p152 = pnand %p150, %p151
      %p153 = pneg %p152
      // Predicated region
      $region9: #{tpu_custom_call.1} parent=5 // pred_check
        _
      $region10: #{tpu_custom_call.1} parent=5 // pred_check_branch
        %155 = sbr.rel (%p152) target = $region12
      $region11: #{tpu_custom_call.1} parent=5 // pred_region
        %s156 = ssub.s32 %s22, 1
      $region12: #{tpu_custom_call.1} parent=5 // pred_fallthru
        _
      %p157 = scmp.lt.s32.totalorder %s22, 2
      // Predicated region
      $region13: #{tpu_custom_call.1} parent=5 // pred_check
        %p158 = pneg %p157
      $region14: #{tpu_custom_call.1} parent=5 // pred_check_branch
        %160 = sbr.rel (%p158) target = $region16
      $region15: #{tpu_custom_call.1} parent=5 // pred_region
        // Predicated region
        $region17: #{tpu_custom_call.1} parent=15 // pred_check
          %p161 = pneg %p56
        $region18: #{tpu_custom_call.1} parent=15 // pred_check_branch
          %163 = sbr.rel (%p161) target = $region20
        $region19: #{tpu_custom_call.1} parent=15 // pred_region
          %s164 = sand.u32 %s46, 1
          %s165 = scalar_lea.sflag [#allocation3], %s164
          %s166 = sand.u32 %s46, 1
          %s167 = smul.addr %s166, 8
          %s168 = scalar_lea.vmem [#allocation2], %s167
          %170 = vsyncadd %s165, 0
          %s171 = smul.addr %s29, 4
          %s172 = sadd.s32 %s30, %s171
          %s173 = smul.addr %s172, 2
          %s174 = scalar_lea.hbm %s0, %s173
          %s175 = sshll.u32 %s174, 4
          %s176 = int_to_ptr.hbm [resolvable:$true] %s175
          %s177 = sshll.u32 %s168, 4
          %s178 = int_to_ptr.vmem [resolvable:$true] %s177
          %183 = dma.hbm_to_vmem [thread:$0]  %s176, 128, %s178, %s165, 32, 32, 2
        $region20: #{tpu_custom_call.1} parent=15 // pred_fallthru
          _
        // Predicated region
        $region21: #{tpu_custom_call.1} parent=15 // pred_check
          %p184 = pneg %p84
        $region22: #{tpu_custom_call.1} parent=15 // pred_check_branch
          %186 = sbr.rel (%p184) target = $region24
        $region23: #{tpu_custom_call.1} parent=15 // pred_region
          %s187 = sand.u32 %s74, 1
          %s188 = scalar_lea.sflag [#allocation6], %s187
          %s189 = sand.u32 %s74, 1
          %s190 = smul.addr %s189, 4
          %s191 = scalar_lea.vmem [#allocation5], %s190
          %193 = vsyncadd %s188, 0
          %s194 = smul.addr %s29, 4
          %s195 = sadd.s32 %s30, %s194
          %s196 = scalar_lea.hbm %s1, %s195
          %s197 = sshll.u32 %s196, 4
          %s198 = int_to_ptr.hbm [resolvable:$true] %s197
          %s199 = sshll.u32 %s191, 4
          %s200 = int_to_ptr.vmem [resolvable:$true] %s199
          %205 = dma.hbm_to_vmem [thread:$0]  %s198, 64, %s200, %s188, 16, 16, 1
        $region24: #{tpu_custom_call.1} parent=15 // pred_fallthru
          _
      $region16: #{tpu_custom_call.1} parent=5 // pred_fallthru
        _
      %p206 = scmp.le.s32.totalorder 1, %s22
      %p207 = scmp.lt.s32.totalorder %s22, 3
      %p208 = pnand %p206, %p207
      %p209 = pneg %p208
      // Predicated region
      $region25: #{tpu_custom_call.1} parent=5 // pred_check
        _
      $region26: #{tpu_custom_call.1} parent=5 // pred_check_branch
        %211 = sbr.rel (%p208) target = $region28
      $region27: #{tpu_custom_call.1} parent=5 // pred_region
        %s212 = ssub.s32 %s22, 1
        %s213 = sand.u32 %s49, 1
        %s214 = scalar_lea.sflag [#allocation3], %s213
        %s215 = sand.u32 %s49, 1
        %s216 = smul.addr %s215, 8
        %s217 = scalar_lea.vmem [#allocation2], %s216
        // Predicated region
        $region29: #{tpu_custom_call.1} parent=27 // pred_check
          %p218 = pneg %p62
        $region30: #{tpu_custom_call.1} parent=27 // pred_check_branch
          %220 = sbr.rel (%p218) target = $region32
        $region31: #{tpu_custom_call.1} parent=27 // pred_region
          %222 = dma.done %s214, 128
        $region32: #{tpu_custom_call.1} parent=27 // pred_fallthru
          _
        %s223 = sand.u32 %s77, 1
        %s224 = scalar_lea.sflag [#allocation6], %s223
        %s225 = sand.u32 %s77, 1
        %s226 = smul.addr %s225, 4
        %s227 = scalar_lea.vmem [#allocation5], %s226
        // Predicated region
        $region33: #{tpu_custom_call.1} parent=27 // pred_check
          %p228 = pneg %p90
        $region34: #{tpu_custom_call.1} parent=27 // pred_check_branch
          %230 = sbr.rel (%p228) target = $region36
        $region35: #{tpu_custom_call.1} parent=27 // pred_region
          %232 = dma.done %s224, 64
        $region36: #{tpu_custom_call.1} parent=27 // pred_fallthru
          _
        %s233 = sand.u32 %s49, 1
        %s234 = scalar_lea.sflag [#allocation3], %s233
        %s235 = sand.u32 %s49, 1
        %s236 = smul.addr %s235, 8
        %s237 = scalar_lea.vmem [#allocation2], %s236
        %p238 = pneg %p62
        %p239 = pneg %p59
        %s240 = sand.u32 %s77, 1
        %s241 = scalar_lea.sflag [#allocation6], %s240
        %s242 = sand.u32 %s77, 1
        %s243 = smul.addr %s242, 4
        %s244 = scalar_lea.vmem [#allocation5], %s243
        %p245 = pneg %p90
        %p246 = pneg %p87
        %p247 = pneg %p116
        %p248 = pneg %p113
        %s249 = sand.u32 %s103, 1
        %s250 = scalar_lea.sflag [#allocation4], %s249
        %s251 = sand.u32 %s103, 1
        %s252 = smul.addr %s251, 4
        %s253 = scalar_lea.vmem [#allocation7], %s252
        %p254 = pneg %p142
        %p255 = pneg %p139
        %s256 = sand.u32 %s129, 1
        %s257 = scalar_lea.sflag [#allocation9], %s256
        %s258 = sand.u32 %s129, 1
        %s259 = smul.addr %s258, 4
        %s260 = scalar_lea.vmem [#allocation8], %s259
        %p261 = scmp.eq.s32.totalorder %s32, 0
        // Predicated region
        $region37: #{tpu_custom_call.1} parent=27 // pred_check
          %p262 = pneg %p261
        $region38: #{tpu_custom_call.1} parent=27 // pred_check_branch
          %264 = sbr.rel (%p262) target = $region40
        $region39: #{tpu_custom_call.1} parent=27 // pred_region
          %265 = vst [vmem:[%s253] sm:$0xf] 0.0
          %266 = vst [vmem:[%s260] sm:$0xf] 0.0
        $region40: #{tpu_custom_call.1} parent=27 // pred_fallthru
          _
        %v267 = vld [vmem:[%s217] sm:$0x3]
        %v268 = vld [vmem:[%s217 + $0x2] sm:$0x3]
        %v269 = vld [vmem:[%s217 + $0x4] sm:$0x3]
        %v270 = vld [vmem:[%s217 + $0x6] sm:$0x3]
        %v271 = vld [vmem:[%s227] sm:$0x1]
        %v272 = vld [vmem:[%s227 + $0x1] sm:$0x1]
        %v273 = vld [vmem:[%s227 + $0x2] sm:$0x1]
        %v274 = vld [vmem:[%s227 + $0x3] sm:$0x1]
        %v275 = vunpack.c.l.bf16 %v271
        %v276 = vunpack.c.l.bf16 %v272
        %v277 = vunpack.c.l.bf16 %v273
        %v278 = vunpack.c.l.bf16 %v274
        %vm279 = vcmask 1041408
        %v280 = vsel %vm279, %v267, -inf
        %v281 = vsel %vm279, %v268, -inf
        %v282 = vsel %vm279, %v269, -inf
        %v283 = vsel %vm279, %v270, -inf
        %v284 = vmax.f32 %v280, %v281
        %v285 = vmax.f32 %v282, %v283
        %v286 = vmax.f32 %v284, %v285
        %v287 = vsub.f32 %v267, %v286
        %v288 = vsub.f32 %v268, %v286
        %v289 = vsub.f32 %v269, %v286
        %v290 = vsub.f32 %v270, %v286
        %v291 = vmul.f32 %v287, 1.442695
        %v292 = vpow.pop %v291
        %v293 = vmul.f32 %v288, 1.442695
        %v294 = vpow.pop %v293
        %v295 = vmul.f32 %v289, 1.442695
        %v296 = vpow.pop %v295
        %v297 = vmul.f32 %v290, 1.442695
        %v298 = vpow.pop %v297
        %v299 = vsel %vm279, %v292, 0.0
        %v300 = vsel %vm279, %v294, 0.0
        %v301 = vadd.f32 %v299, %v300
        %v302 = vsel %vm279, %v296, 0.0
        %v303 = vadd.f32 %v301, %v302
        %v304 = vsel %vm279, %v298, 0.0
        %v305 = vadd.f32 %v303, %v304
        %v306 = vrcp.pop %v305
        %v307 = vmul.f32 %v305, %v306
        %v308 = vsub.f32 1.0, %v307
        %v309 = vmul.f32 %v306, %v308
        %v310 = vadd.f32 %v306, %v309
        %vm311 = vweird.f32 %v305
        %vm312 = vweird.f32 %v306
        %vm313 = vmor %vm311, %vm312
        %v314 = vsel %vm313, %v306, %v310
        %v315 = vand.u32 2147483647, %v305
        %vm316 = vcmp.eq.f32.partialorder %v315, 8.507059e+37
        %v317 = vand.u32 %v305, 2147483648
        %v318 = vor.u32 1.1754944e-38, %v317
        %v319 = vsel %vm316, %v318, %v314
        %v320 = vmul.f32 %v292, %v319
        %v321 = vmul.f32 %v294, %v319
        %v322 = vmul.f32 %v296, %v319
        %v323 = vmul.f32 %v298, %v319
        %v324 = vld [vmem:[%s253] sm:$0xf]
        %v325 = vmul.f32 %v320, %v275
        %v326 = vmul.f32 %v321, %v276
        %v327 = vmul.f32 %v322, %v277
        %v328 = vmul.f32 %v323, %v278
        %v329 = vsel %vm279, %v325, 0.0
        %v330 = vrot.slane %v329, 4
        %v331 = vadd.f32 %v329, %v330
        %v332 = vrot.slane %v331, 2
        %v333 = vadd.f32 %v331, %v332
        %v334 = vrot.slane %v333, 1
        %v335 = vadd.f32 %v333, %v334
        %v336 = vsel %vm279, %v326, 0.0
        %v337 = vrot.slane %v336, 4
        %v338 = vadd.f32 %v336, %v337
        %v339 = vrot.slane %v338, 2
        %v340 = vadd.f32 %v338, %v339
        %v341 = vrot.slane %v340, 1
        %v342 = vadd.f32 %v340, %v341
        %v343 = vsel %vm279, %v327, 0.0
        %v344 = vrot.slane %v343, 4
        %v345 = vadd.f32 %v343, %v344
        %v346 = vrot.slane %v345, 2
        %v347 = vadd.f32 %v345, %v346
        %v348 = vrot.slane %v347, 1
        %v349 = vadd.f32 %v347, %v348
        %v350 = vsel %vm279, %v328, 0.0
        %v351 = vrot.slane %v350, 4
        %v352 = vadd.f32 %v350, %v351
        %v353 = vrot.slane %v352, 2
        %v354 = vadd.f32 %v352, %v353
        %v355 = vrot.slane %v354, 1
        %v356 = vadd.f32 %v354, %v355
        %vm361 = vcmask 1041409
        %v362 = vsel %vm361, %v342, %v335
        %vm363 = vcmask 1042434
        %v364 = vsel %vm363, %v349, %v362
        %vm365 = vcmask 1043459
        %v366 = vsel %vm365, %v356, %v364
        %v368 = vadd.f32 %v324, %v366
        %369 = vst [vmem:[%s253] sm:$0xf] %v368
        %v370 = vmul.f32 %v320, %v320
        %v371 = vmul.f32 %v321, %v321
        %v372 = vmul.f32 %v322, %v322
        %v373 = vmul.f32 %v323, %v323
        %v374 = vmul.f32 %v275, %v275
        %v375 = vmul.f32 %v276, %v276
        %v376 = vmul.f32 %v277, %v277
        %v377 = vmul.f32 %v278, %v278
        %v378 = vadd.f32 %v370, %v374
        %v379 = vadd.f32 %v371, %v375
        %v380 = vadd.f32 %v372, %v376
        %v381 = vadd.f32 %v373, %v377
        %v382 = vld [vmem:[%s260] sm:$0xf]
        %v383 = vsel %vm279, %v378, 0.0
        %v384 = vrot.slane %v383, 4
        %v385 = vadd.f32 %v383, %v384
        %v386 = vrot.slane %v385, 2
        %v387 = vadd.f32 %v385, %v386
        %v388 = vrot.slane %v387, 1
        %v389 = vadd.f32 %v387, %v388
        %v390 = vsel %vm279, %v379, 0.0
        %v391 = vrot.slane %v390, 4
        %v392 = vadd.f32 %v390, %v391
        %v393 = vrot.slane %v392, 2
        %v394 = vadd.f32 %v392, %v393
        %v395 = vrot.slane %v394, 1
        %v396 = vadd.f32 %v394, %v395
        %v397 = vsel %vm279, %v380, 0.0
        %v398 = vrot.slane %v397, 4
        %v399 = vadd.f32 %v397, %v398
        %v400 = vrot.slane %v399, 2
        %v401 = vadd.f32 %v399, %v400
        %v402 = vrot.slane %v401, 1
        %v403 = vadd.f32 %v401, %v402
        %v404 = vsel %vm279, %v381, 0.0
        %v405 = vrot.slane %v404, 4
        %v406 = vadd.f32 %v404, %v405
        %v407 = vrot.slane %v406, 2
        %v408 = vadd.f32 %v406, %v407
        %v409 = vrot.slane %v408, 1
        %v410 = vadd.f32 %v408, %v409
        %v415 = vsel %vm361, %v396, %v389
        %v416 = vsel %vm363, %v403, %v415
        %v417 = vsel %vm365, %v410, %v416
        %v419 = vadd.f32 %v382, %v417
        %420 = vst [vmem:[%s260] sm:$0xf] %v419
        %s421 = sand.u32 %s103, 1
        %s422 = scalar_lea.sflag [#allocation4], %s421
        %s423 = sand.u32 %s103, 1
        %s424 = smul.addr %s423, 4
        %s425 = scalar_lea.vmem [#allocation7], %s424
        %s426 = sand.u32 %s129, 1
        %s427 = scalar_lea.sflag [#allocation9], %s426
        %s428 = sand.u32 %s129, 1
        %s429 = smul.addr %s428, 4
        %s430 = scalar_lea.vmem [#allocation8], %s429
        // Predicated region
        $region41: #{tpu_custom_call.1} parent=27 // pred_check
          %p431 = pneg %p113
        $region42: #{tpu_custom_call.1} parent=27 // pred_check_branch
          %433 = sbr.rel (%p431) target = $region44
        $region43: #{tpu_custom_call.1} parent=27 // pred_region
          %435 = vsyncadd %s422, 0
          %s436 = smul.addr %s31, 4
          %s437 = scalar_lea.hbm %s2, %s436
          %s439 = sshll.u32 %s425, 4
          %s440 = int_to_ptr.vmem [resolvable:$true] %s439
          %s441 = sshll.u32 %s437, 4
          %s442 = int_to_ptr.hbm [resolvable:$true] %s441
          %444 = dma.vmem_to_hbm [thread:$0]  %s440, 64, %s442, %s422
        $region44: #{tpu_custom_call.1} parent=27 // pred_fallthru
          _
        // Predicated region
        $region45: #{tpu_custom_call.1} parent=27 // pred_check
          %p445 = pneg %p139
        $region46: #{tpu_custom_call.1} parent=27 // pred_check_branch
          %447 = sbr.rel (%p445) target = $region48
        $region47: #{tpu_custom_call.1} parent=27 // pred_region
          %449 = vsyncadd %s427, 0
          %s450 = smul.addr %s31, 4
          %s451 = scalar_lea.hbm %s3, %s450
          %s453 = sshll.u32 %s430, 4
          %s454 = int_to_ptr.vmem [resolvable:$true] %s453
          %s455 = sshll.u32 %s451, 4
          %s456 = int_to_ptr.hbm [resolvable:$true] %s455
          %458 = dma.vmem_to_hbm [thread:$0]  %s454, 64, %s456, %s427
        $region48: #{tpu_custom_call.1} parent=27 // pred_fallthru
          _
      $region28: #{tpu_custom_call.1} parent=5 // pred_fallthru
        _
      %p459 = scmp.le.s32.totalorder 2, %s22
      // Predicated region
      $region49: #{tpu_custom_call.1} parent=5 // pred_check
        %p460 = pneg %p459
      $region50: #{tpu_custom_call.1} parent=5 // pred_check_branch
        %462 = sbr.rel (%p460) target = $region52
      $region51: #{tpu_custom_call.1} parent=5 // pred_region
        %s463 = ssub.s32 %s22, 2
        // Predicated region
        $region53: #{tpu_custom_call.1} parent=51 // pred_check
          %p464 = pneg %p119
        $region54: #{tpu_custom_call.1} parent=51 // pred_check_branch
          %466 = sbr.rel (%p464) target = $region56
        $region55: #{tpu_custom_call.1} parent=51 // pred_region
          %s467 = sand.u32 %s104, 1
          %s468 = scalar_lea.sflag [#allocation4], %s467
          %s469 = sand.u32 %s104, 1
          %s470 = smul.addr %s469, 4
          %s471 = scalar_lea.vmem [#allocation7], %s470
          %473 = dma.done %s468, 64
        $region56: #{tpu_custom_call.1} parent=51 // pred_fallthru
          _
        // Predicated region
        $region57: #{tpu_custom_call.1} parent=51 // pred_check
          %p474 = pneg %p145
        $region58: #{tpu_custom_call.1} parent=51 // pred_check_branch
          %476 = sbr.rel (%p474) target = $region60
        $region59: #{tpu_custom_call.1} parent=51 // pred_region
          %s477 = sand.u32 %s130, 1
          %s478 = scalar_lea.sflag [#allocation9], %s477
          %s479 = sand.u32 %s130, 1
          %s480 = smul.addr %s479, 4
          %s481 = scalar_lea.vmem [#allocation8], %s480
          %483 = dma.done %s478, 64
        $region60: #{tpu_custom_call.1} parent=51 // pred_fallthru
          _
      $region52: #{tpu_custom_call.1} parent=5 // pred_fallthru
        _
    $region6: #{tpu_custom_call.1} parent=1 // loop_footer
      %s26 = sadd.s32 1, %s22
    $region7: #{tpu_custom_call.1} parent=1 // loop_footer_branch
      %21 = sbr.rel target = $region3
    $region8: #{tpu_custom_call.1} parent=1 // loop_exit
      _
    %484 = vsyncpa [#allocation3], 1
    %s485 = scalar_lea.sflag [#allocation3], 1
    %486 = vsyncpa %s485, 1
    %487 = vsyncpa [#allocation6], 1
    %s488 = scalar_lea.sflag [#allocation6], 1
    %489 = vsyncpa %s488, 1
    %490 = vsyncpa [#allocation4], 1
    %s491 = scalar_lea.sflag [#allocation4], 1
    %492 = vsyncpa %s491, 1
    %493 = vsyncpa [#allocation9], 1
    %s494 = scalar_lea.sflag [#allocation9], 1
    %495 = vsyncpa %s494, 1

</llo_original>
